<compile_context>
chip_gen: v5e
topology: v5e:2x2
jax: 0.10.0
libtpu: 0.0.40
codegen_flags: <defaults>
</compile_context>

<pallas_src>
import numpy as np
import jax
import jax.numpy as jnp
from jax.experimental import pallas as pl
from jax.experimental.pallas import tpu as pltpu


def _invconv_kernel(w_ref, x_ref, o_ref):
    # w_ref: (C, C) channel-mixing matrix (VMEM-resident across the grid).
    # x_ref / o_ref: (TB, C, TILE_HW) lane-dense blocks (spatial on the lane axis).
    # 1x1 conv == per-position channel mix:  z[b, o, p] = sum_c W[o, c] * x[b, c, p].
    o_ref[...] = jnp.einsum(
        "oc,bct->bot",
        w_ref[...],
        x_ref[...],
        preferred_element_type=jnp.float32,
    ).astype(o_ref.dtype)


def _largest_divisor_leq(n, cap):
    """Largest divisor of n that is <= cap (always >= 1)."""
    cap = max(1, min(int(n), int(cap)))
    for d in range(cap, 0, -1):
        if n % d == 0:
            return d
    return 1


def _vmem_budget():
    """Generation-aware scoped-VMEM limit and per-tile-buffer byte budget."""
    cap = None
    try:
        cap = getattr(pltpu.get_tpu_info(), "vmem_capacity_bytes", None)
    except Exception:
        cap = None
    if not cap:
        cap = 64 * 1024 * 1024  # conservative fallback (v7x per-TC VMEM)
    # Leave headroom for compiler scratch; never ask for more than 96 MiB.
    vmem_limit = min((int(cap) * 3) // 4, 96 * 1024 * 1024)
    # input + output double-buffered => ~4 live tile buffers + resident weight.
    per_buffer = min(vmem_limit // 6, 16 * 1024 * 1024)
    return int(vmem_limit), int(per_buffer)


def _choose_blocking(B, C, HW_pad, itemsize, per_buffer_budget):
    """Pick (TB, tile) so each (TB, C, tile) block is ~per_buffer_budget bytes."""
    per_batch_bytes = C * HW_pad * itemsize
    if per_batch_bytes >= per_buffer_budget:
        # One batch element per step; tile the spatial axis (multiple of 128).
        TB = 1
        m = HW_pad // 128
        max_k = max(1, per_buffer_budget // (C * itemsize * 128))
        tile = 128 * _largest_divisor_leq(m, max_k)
    else:
        # Whole spatial extent per step; fold batch elements to reach target bytes.
        tile = HW_pad
        tb_cap = max(1, per_buffer_budget // per_batch_bytes)
        TB = _largest_divisor_leq(B, tb_cap)

    # v7x megacore: guarantee >= 2 grid steps so both TensorCores get work.
    steps = (B // TB) * (HW_pad // tile)
    if steps < 2:
        if TB > 1:
            TB = _largest_divisor_leq(B, max(1, B // 2))
        elif tile % 256 == 0:
            tile = tile // 2
    return TB, tile


def inv_conv_forward(x, sldj, weight, reverse=False, tile_hw=None, tile_b=None):
    """Forward of the invertible 1x1 conv.

    Args:
      x:      (B, C, H, W) float32, NCHW like the PyTorch module.
      sldj:   (B,) float32 running sum of log-determinant Jacobians.
      weight: (C, C) float32 invertible mixing matrix.
      reverse: if True, apply the inverse convolution.
      tile_hw: optional override of the spatial tile (multiple of 128 dividing
               the padded H*W, or the full padded extent).
      tile_b:  optional override of the batch fold (must divide B).

    Returns:
      (z, sldj) with z of shape (B, C, H, W).
    """
    B, C, H, W = x.shape
    HW = H * W

    # Tiny CxC linear algebra: keep in plain JAX.
    ldj = jnp.linalg.slogdet(weight)[1] * H * W
    if reverse:
        # TODO(synk): PyTorch inverts in float64; without x64 enabled this tiny CxC solve is f32.
        w = jnp.linalg.solve(weight, jnp.eye(C, dtype=weight.dtype)).astype(x.dtype)
        sldj = sldj - ldj
    else:
        w = weight.astype(x.dtype)
        sldj = sldj + ldj

    # NCHW -> (B, C, H*W): pure reshape (no HBM transpose).  Pad the spatial
    # axis to a multiple of 128 so loads/stores are lane-dense (unmasked vst).
    x3 = x.reshape(B, C, HW)
    HW_pad = ((HW + 127) // 128) * 128
    if HW_pad != HW:
        x3 = jnp.pad(x3, ((0, 0), (0, 0), (0, HW_pad - HW)))

    itemsize = jnp.dtype(x.dtype).itemsize
    vmem_limit, per_buffer = _vmem_budget()
    TB, tile = _choose_blocking(B, C, HW_pad, itemsize, per_buffer)
    if tile_hw is not None:
        tile = tile_hw
    if tile_b is not None:
        TB = tile_b
    assert HW_pad % tile == 0, f"tile={tile} must divide padded H*W={HW_pad}"
    assert tile == HW_pad or tile % 128 == 0, "spatial tile must be lane-dense"
    assert B % TB == 0, f"tile_b={TB} must divide B={B}"

    nb, nt = B // TB, HW_pad // tile
    cost = pl.CostEstimate(
        flops=2 * B * HW_pad * C * C,
        transcendentals=0,
        bytes_accessed=2 * B * C * HW_pad * itemsize + nb * nt * C * C * itemsize,
    )

    z3 = pl.pallas_call(
        _invconv_kernel,
        out_shape=jax.ShapeDtypeStruct((B, C, HW_pad), x.dtype),
        grid=(nb, nt),
        in_specs=[
            # Weight stays resident in VMEM (same block for every grid step).
            pl.BlockSpec((C, C), lambda b, t: (0, 0)),
            # (TB, C, tile) block: batch folded, spatial lane-dense.
            pl.BlockSpec((TB, C, tile), lambda b, t: (b, 0, t)),
        ],
        out_specs=pl.BlockSpec((TB, C, tile), lambda b, t: (b, 0, t)),
        compiler_params=pltpu.CompilerParams(
            dimension_semantics=("parallel", "parallel"),
            vmem_limit_bytes=vmem_limit,
        ),
        cost_estimate=cost,
    )(w, x3)

    z = z3[:, :, :HW].reshape(B, C, H, W)
    return z, sldj


def make_invconv_weight(num_channels, seed=0):
    """Deterministic init matching the PyTorch module: QR of a random matrix."""
    rng = np.random.RandomState(seed)
    w_init = rng.randn(num_channels, num_channels)
    w_init = np.linalg.qr(w_init)[0].astype(np.float32)
    return jnp.asarray(w_init)


if __name__ == "__main__":
    B, C, H, W = 2, 4, 16, 16

    key = jax.random.PRNGKey(0)
    kx, ks = jax.random.split(key)
    x = jax.random.normal(kx, (B, C, H, W), dtype=jnp.float32)
    sldj = jax.random.normal(ks, (B,), dtype=jnp.float32)

    weight = make_invconv_weight(C, seed=0)

    # Default run: auto blocking (forces >= 2 parallel grid steps).
    z, sldj_out = inv_conv_forward(x, sldj, weight, reverse=False)
    z = jax.block_until_ready(z)
    sldj_out = jax.block_until_ready(sldj_out)

    # Force explicit spatial tiling (grid = (2, 2)) to exercise the pipelined path.
    z_tiled, _ = inv_conv_forward(x, sldj, weight, reverse=False, tile_hw=128, tile_b=1)
    z_tiled = jax.block_until_ready(z_tiled)

    # Reverse round-trip through the same kernel.
    x_rec, sldj_rec = inv_conv_forward(z, sldj_out, weight, reverse=True)
    x_rec = jax.block_until_ready(x_rec)
    sldj_rec = jax.block_until_ready(sldj_rec)

    # Pure-JAX reference check (1x1 conv == channel einsum).
    z_ref = jnp.einsum("oc,bchw->bohw", weight, x)
    sldj_ref = sldj + jnp.linalg.slogdet(weight)[1] * H * W
    assert z.shape == (B, C, H, W)
    assert sldj_out.shape == (B,)
    np.testing.assert_allclose(np.asarray(z), np.asarray(z_ref), rtol=1e-5, atol=1e-5)
    np.testing.assert_allclose(
        np.asarray(z_tiled), np.asarray(z_ref), rtol=1e-5, atol=1e-5
    )
    np.testing.assert_allclose(
        np.asarray(sldj_out), np.asarray(sldj_ref), rtol=1e-5, atol=1e-5
    )
    np.testing.assert_allclose(np.asarray(x_rec), np.asarray(x), rtol=1e-4, atol=1e-4)
    np.testing.assert_allclose(
        np.asarray(sldj_rec), np.asarray(sldj), rtol=1e-4, atol=1e-4
    )

    print("KERNEL_OK")
</pallas_src>

<mosaic_0001>
module attributes {stable_mosaic.version = 11 : i64} {
  func.func @_invconv_kernel(%arg0: i32, %arg1: i32, %arg2: memref<4x4xf32, #tpu.memory_space<vmem>>, %arg3: memref<1x4x256xf32, #tpu.memory_space<vmem>>, %arg4: memref<1x4x256xf32, #tpu.memory_space<vmem>>) attributes {dimension_semantics = [#tpu.dimension_semantics<parallel>, #tpu.dimension_semantics<parallel>], iteration_bounds = array<i64: 2, 1>, scalar_prefetch = 0 : i64, scratch_operands = 0 : i64, tpu.core_type = #tpu.core_type<tc>, window_params = [{pipeline_mode = #tpu.pipeline_mode<synchronous>, transform_indices = @transform_0, window_bounds = array<i64: 4, 4>}, {transform_indices = @transform_1, window_bounds = array<i64: 1, 4, 256>}, {transform_indices = @transform_2, window_bounds = array<i64: 1, 4, 256>}]} {
    %c0 = arith.constant 0 : index
    %c0_0 = arith.constant 0 : index
    %0 = vector.load %arg2[%c0, %c0_0] : memref<4x4xf32, #tpu.memory_space<vmem>>, vector<4x4xf32>
    %c0_1 = arith.constant 0 : index
    %c0_2 = arith.constant 0 : index
    %c0_3 = arith.constant 0 : index
    %1 = vector.load %arg3[%c0_1, %c0_2, %c0_3] : memref<1x4x256xf32, #tpu.memory_space<vmem>>, vector<1x4x256xf32>
    "tpu.trace_start"() <{level = 10 : i32, message = "oc,bct->bot"}> : () -> ()
    %cst = arith.constant dense<0.000000e+00> : vector<1x256x4xf32>
    %2 = tpu.matmul %1, %0, %cst {dimension_numbers = #tpu.dot_dimension_numbers<[1], [1], [0, 2], [0], [0, 0, 0, 2, 1, 0], [], []>} : vector<1x4x256xf32>, vector<4x4xf32>, vector<1x256x4xf32> -> vector<1x256x4xf32>
    %3 = tpu.transpose %2, [0, 2, 1] : vector<1x256x4xf32> -> vector<1x4x256xf32>
    "tpu.trace_stop"() : () -> ()
    %c0_4 = arith.constant 0 : index
    %c0_5 = arith.constant 0 : index
    %c0_6 = arith.constant 0 : index
    %4 = vector.load %arg4[%c0_4, %c0_5, %c0_6] : memref<1x4x256xf32, #tpu.memory_space<vmem>>, vector<1x4x256xf32>
    tpu.vector_store %arg4[%c0_4, %c0_5, %c0_6], %3 {strides = array<i32>} : memref<1x4x256xf32, #tpu.memory_space<vmem>>, vector<1x4x256xf32>,
    return
  }
  func.func @transform_0(%arg0: i32, %arg1: i32) -> (i32, i32) {
    %c0_i32 = arith.constant 0 : i32
    %c0_i32_0 = arith.constant 0 : i32
    %c0_i32_1 = arith.constant 0 : i32
    return %c0_i32, %c0_i32_0 : i32, i32
  }
  func.func @transform_1(%arg0: i32, %arg1: i32) -> (i32, i32, i32) {
    %c0_i32 = arith.constant 0 : i32
    %c0_i32_0 = arith.constant 0 : i32
    return %arg0, %c0_i32, %arg1 : i32, i32, i32
  }
  func.func @transform_2(%arg0: i32, %arg1: i32) -> (i32, i32, i32) {
    %c0_i32 = arith.constant 0 : i32
    %c0_i32_0 = arith.constant 0 : i32
    return %arg0, %c0_i32, %arg1 : i32, i32, i32
  }
}

</mosaic_0001>

<llo_original>
// kernel: tpu_custom_call.1
$region0: #{tpu_custom_call.1}
  #allocation0 [shape = 'u32[]', space=smem, size = 0x4, offset = 0x4, fixed_abs, tag = 'smem constant byte address 0x4 - core index']
  #allocation1 [shape = 'u32[72,128]{1,0:T(1,128)}', space=vmem, size = 0x9000, scoped, tag = 'internal scratch']
  %s0 = inlined_call_operand.hbm [shape: f32[4,4], index: 0, kind: input, shape index: {}]
  %s1 = inlined_call_operand.hbm [shape: f32[2,4,256], index: 1, kind: input, shape index: {}]
  %s2 = inlined_call_operand.hbm [shape: f32[2,4,256], index: 2, kind: output, shape index: {}]
  %s3 = sld [smem:[#allocation0]]
  $region49: #{tpu_custom_call.1} parent=0
    _
  %s5 = ssub.s32 1, %s3
  %s6 = scalar_select 0, %s5, %s3
  $region1: #{tpu_custom_call.1} parent=0
    #allocation2 [shape = 'u8[2048]{0}', space=vmem, size = 0x800, scoped, tag = 'input window, operand 0, single buffered']
    #allocation3 [shape = 's32[2]{0}', space=sflag, size = 0x8, scoped, tag = 'scoped memory for tpu_custom_call.1']
    #allocation4 [shape = 's32[2]{0}', space=sflag, size = 0x8, scoped, tag = 'scoped memory for tpu_custom_call.1']
    #allocation5 [shape = 'u8[8192]{0}', space=vmem, size = 0x2000, scoped, tag = 'input window, operand 1']
    #allocation6 [shape = 's32[2]{0}', space=sflag, size = 0x8, scoped, tag = 'scoped memory for tpu_custom_call.1']
    #allocation7 [shape = 'u8[8192]{0}', space=vmem, size = 0x2000, scoped, tag = 'output window, operand 0']
    %7 = vsyncpa [#allocation3], 0
    %8 = vsyncpa [#allocation6], 0
    %s9 = scalar_lea.sflag [#allocation6], 1
    %10 = vsyncpa %s9, 0
    %11 = vsyncpa [#allocation4], 0
    %s12 = scalar_lea.sflag [#allocation4], 1
    %13 = vsyncpa %s12, 0
    loop: start=0, step=1, limit=4
    $region2: #{tpu_custom_call.1} parent=1 // loop_pre_header
      _
    $region3: #{tpu_custom_call.1} parent=1 // loop_header
      %s15 = sphi 0, %s19
      %p16 = scmp.ge.s32.totalorder %s15, 4
      %s22 = sphi 0, %s34
      %s23 = sphi 0, %s30
      %s24 = sphi 0, %s22
      %s25 = sphi 0, %s23
      %s26 = sphi 0, %s24
      %s27 = sphi 0, %s25
      %s35 = sphi 0, %s35
      %s37 = sphi 0, %s35
      %s38 = sphi 0, %s37
      %s52 = sphi 0, %s38
      %s60 = sphi 0, %s62
      %s63 = sphi 0, %s60
      %s64 = sphi 0, %s63
      %s80 = sphi 0, %s64
      %s88 = sphi 0, %s90
      %s91 = sphi 0, %s88
      %s92 = sphi 0, %s91
      %s108 = sphi 0, %s92
    $region4: #{tpu_custom_call.1} parent=1 // loop_header_branch
      %18 = sbr.rel (%p16) target = $region8
    $region5: #{tpu_custom_call.1} parent=1 // loop_body
      %s20 = ssub.s32 %s15, 1
      %s21 = ssub.s32 %s15, 2
      %s28 = sadd.s32 1, %s23
      %p29 = scmp.ge.s32.totalorder %s28, 1
      %s30 = scalar_select %p29, 0, %s28
      %s31 = sadd.s32 1, %s22
      %s32 = scalar_select %p29, %s31, %s22
      %p33 = scmp.ge.s32.totalorder %s32, 2
      %s34 = scalar_select %p33, 0, %s32
      %s36 = sadd.s32 %s35, 1
      %p39 = scmp.eq.s32.totalorder %s15, 1
      %p40 = scmp.ne.s32.totalorder %s35, %s37
      %p41 = scmp.eq.s32.totalorder %s15, 0
      %p42 = por %p40, %p41
      %p43 = scmp.ne.s32.totalorder %s35, %s37
      %p44 = scmp.eq.s32.totalorder %s20, 1
      %p45 = por %p43, %p44
      %p46 = scmp.ne.s32.totalorder %s37, %s38
      %p47 = scmp.eq.s32.totalorder %s20, 0
      %p48 = por %p46, %p47
      %p49 = scmp.ne.s32.totalorder %s37, %s38
      %p50 = scmp.eq.s32.totalorder %s21, 1
      %p51 = por %p49, %p50
      %p53 = scmp.ne.s32.totalorder %s38, %s52
      %p54 = scmp.eq.s32.totalorder %s21, 0
      %p55 = por %p53, %p54
      %s56 = ssub.s32 %s22, %s34
      %s57 = ssub.s32 %s23, %s30
      %s58 = sor.u32 %s56, %s57
      %p59 = scmp.eq.s32.totalorder %s58, 0
      %s61 = sadd.s32 %s60, 1
      %s62 = scalar_select %p59, %s60, %s61
      %p65 = pneg %p59
      %p66 = scmp.eq.s32.totalorder %s15, 1
      %p67 = por %p65, %p66
      %p68 = scmp.ne.s32.totalorder %s60, %s63
      %p69 = scmp.eq.s32.totalorder %s15, 0
      %p70 = por %p68, %p69
      %p71 = scmp.ne.s32.totalorder %s60, %s63
      %p72 = scmp.eq.s32.totalorder %s20, 1
      %p73 = por %p71, %p72
      %p74 = scmp.ne.s32.totalorder %s63, %s64
      %p75 = scmp.eq.s32.totalorder %s20, 0
      %p76 = por %p74, %p75
      %p77 = scmp.ne.s32.totalorder %s63, %s64
      %p78 = scmp.eq.s32.totalorder %s21, 1
      %p79 = por %p77, %p78
      %p81 = scmp.ne.s32.totalorder %s64, %s80
      %p82 = scmp.eq.s32.totalorder %s21, 0
      %p83 = por %p81, %p82
      %s84 = ssub.s32 %s22, %s34
      %s85 = ssub.s32 %s23, %s30
      %s86 = sor.u32 %s84, %s85
      %p87 = scmp.eq.s32.totalorder %s86, 0
      %s89 = sadd.s32 %s88, 1
      %s90 = scalar_select %p87, %s88, %s89
      %p93 = pneg %p87
      %p94 = scmp.eq.s32.totalorder %s15, 1
      %p95 = por %p93, %p94
      %p96 = scmp.ne.s32.totalorder %s88, %s91
      %p97 = scmp.eq.s32.totalorder %s15, 0
      %p98 = por %p96, %p97
      %p99 = scmp.ne.s32.totalorder %s88, %s91
      %p100 = scmp.eq.s32.totalorder %s20, 1
      %p101 = por %p99, %p100
      %p102 = scmp.ne.s32.totalorder %s91, %s92
      %p103 = scmp.eq.s32.totalorder %s20, 0
      %p104 = por %p102, %p103
      %p105 = scmp.ne.s32.totalorder %s91, %s92
      %p106 = scmp.eq.s32.totalorder %s21, 1
      %p107 = por %p105, %p106
      %p109 = scmp.ne.s32.totalorder %s92, %s108
      %p110 = scmp.eq.s32.totalorder %s21, 0
      %p111 = por %p109, %p110
      %p112 = scmp.le.s32.totalorder 1, %s15
      %p113 = scmp.lt.s32.totalorder %s15, 3
      %p114 = pnand %p112, %p113
      %p115 = pneg %p114
      // Predicated region
      $region9: #{tpu_custom_call.1} parent=5 // pred_check
        _
      $region10: #{tpu_custom_call.1} parent=5 // pred_check_branch
        %117 = sbr.rel (%p114) target = $region12
      $region11: #{tpu_custom_call.1} parent=5 // pred_region
        %s118 = ssub.s32 %s15, 1
        // Predicated region
        $region13: #{tpu_custom_call.1} parent=11 // pred_check
          %p119 = pneg %p48
        $region14: #{tpu_custom_call.1} parent=11 // pred_check_branch
          %121 = sbr.rel (%p119) target = $region16
        $region15: #{tpu_custom_call.1} parent=11 // pred_region
          %123 = vsyncadd [#allocation3], 0
          %s125 = sshll.u32 %s0, 4
          %s126 = int_to_ptr.hbm [resolvable:$true] %s125
          %s127 = sshll.u32 [#allocation2], 4
          %s128 = int_to_ptr.vmem [resolvable:$true] %s127
          %130 = dma.hbm_to_vmem [thread:$0]  %s126, 64, %s128, [#allocation3]
        $region16: #{tpu_custom_call.1} parent=11 // pred_fallthru
          _
      $region12: #{tpu_custom_call.1} parent=5 // pred_fallthru
        _
      %p131 = scmp.lt.s32.totalorder %s15, 2
      // Predicated region
      $region17: #{tpu_custom_call.1} parent=5 // pred_check
        %p132 = pneg %p131
      $region18: #{tpu_custom_call.1} parent=5 // pred_check_branch
        %134 = sbr.rel (%p132) target = $region20
      $region19: #{tpu_custom_call.1} parent=5 // pred_region
        // Predicated region
        $region21: #{tpu_custom_call.1} parent=19 // pred_check
          %p135 = pneg %p70
        $region22: #{tpu_custom_call.1} parent=19 // pred_check_branch
          %137 = sbr.rel (%p135) target = $region24
        $region23: #{tpu_custom_call.1} parent=19 // pred_region
          %s138 = sand.u32 %s60, 1
          %s139 = scalar_lea.sflag [#allocation6], %s138
          %s140 = sand.u32 %s60, 1
          %s141 = smul.addr %s140, 8
          %s142 = scalar_lea.vmem [#allocation5], %s141
          %s143 = smul.u32 2, %s23
          %145 = vsyncadd %s139, 0
          %s146 = smul.addr %s22, 2
          %s147 = sadd.s32 %s143, %s146
          %s148 = smul.addr %s147, 4
          %s149 = scalar_lea.hbm %s1, %s148
          %s151 = sshll.u32 %s149, 4
          %s152 = int_to_ptr.hbm [resolvable:$true] %s151
          %s153 = sshll.u32 %s142, 4
          %s154 = int_to_ptr.vmem [resolvable:$true] %s153
          %156 = dma.hbm_to_vmem [thread:$0]  %s152, 128, %s154, %s139
        $region24: #{tpu_custom_call.1} parent=19 // pred_fallthru
          _
      $region20: #{tpu_custom_call.1} parent=5 // pred_fallthru
        _
      %p157 = scmp.le.s32.totalorder 1, %s15
      %p158 = scmp.lt.s32.totalorder %s15, 3
      %p159 = pnand %p157, %p158
      %p160 = pneg %p159
      // Predicated region
      $region25: #{tpu_custom_call.1} parent=5 // pred_check
        _
      $region26: #{tpu_custom_call.1} parent=5 // pred_check_branch
        %162 = sbr.rel (%p159) target = $region28
      $region27: #{tpu_custom_call.1} parent=5 // pred_region
        %s163 = ssub.s32 %s15, 1
        // Predicated region
        $region29: #{tpu_custom_call.1} parent=27 // pred_check
          %p164 = pneg %p48
        $region30: #{tpu_custom_call.1} parent=27 // pred_check_branch
          %166 = sbr.rel (%p164) target = $region32
        $region31: #{tpu_custom_call.1} parent=27 // pred_region
          %168 = dma.done [#allocation3], 64
        $region32: #{tpu_custom_call.1} parent=27 // pred_fallthru
          _
        %s169 = sand.u32 %s63, 1
        %s170 = scalar_lea.sflag [#allocation6], %s169
        %s171 = sand.u32 %s63, 1
        %s172 = smul.addr %s171, 8
        %s173 = scalar_lea.vmem [#allocation5], %s172
        // Predicated region
        $region33: #{tpu_custom_call.1} parent=27 // pred_check
          %p174 = pneg %p76
        $region34: #{tpu_custom_call.1} parent=27 // pred_check_branch
          %176 = sbr.rel (%p174) target = $region36
        $region35: #{tpu_custom_call.1} parent=27 // pred_region
          %178 = dma.done %s170, 128
        $region36: #{tpu_custom_call.1} parent=27 // pred_fallthru
          _
        %p179 = pneg %p48
        %p180 = pneg %p45
        %s181 = sand.u32 %s63, 1
        %s182 = scalar_lea.sflag [#allocation6], %s181
        %s183 = sand.u32 %s63, 1
        %s184 = smul.addr %s183, 8
        %s185 = scalar_lea.vmem [#allocation5], %s184
        %p186 = pneg %p76
        %p187 = pneg %p73
        %p188 = pneg %p104
        %p189 = pneg %p101
        %s190 = sand.u32 %s91, 1
        %s191 = scalar_lea.sflag [#allocation4], %s190
        %s192 = sand.u32 %s91, 1
        %s193 = smul.addr %s192, 8
        %s194 = scalar_lea.vmem [#allocation7], %s193
        %s195 = smul.u32 2, %s25
        %s196 = smul.u32 2, %s25
        %v197 = vld [vmem:[#allocation2] sm:$0xf]
        %v198 = vld [vmem:[%s173] sm:$0xff]
        %200 = vst [vmem:[#allocation1] ss:$2 sm:$0xff] %v198
        %v201 = vld.sshfl [vmem:[#allocation1] sm:$0xff pattern:$0x75316420]
        %v202 = vld.sshfl [vmem:[#allocation1 + $0x8] sm:$0xff pattern:$0x75316420]
        %205 = vxpose.xlu0.b32.start [1/16] %v201, 128
        %206 = vxpose.xlu0.b32.cont [2/16] 0.0, 128
        %207 = vxpose.xlu0.b32.cont [3/16] 0.0, 128
        %208 = vxpose.xlu0.b32.cont [4/16] 0.0, 128
        %209 = vxpose.xlu0.b32.cont [5/16] 0.0, 128
        %210 = vxpose.xlu0.b32.cont [6/16] 0.0, 128
        %211 = vxpose.xlu0.b32.cont [7/16] 0.0, 128
        %212 = vxpose.xlu0.b32.cont [8/16] 0.0, 128
        %213 = vxpose.xlu0.b32.cont [9/16] 0.0, 128
        %214 = vxpose.xlu0.b32.cont [10/16] 0.0, 128
        %215 = vxpose.xlu0.b32.cont [11/16] 0.0, 128
        %216 = vxpose.xlu0.b32.cont [12/16] 0.0, 128
        %217 = vxpose.xlu0.b32.cont [13/16] 0.0, 128
        %218 = vxpose.xlu0.b32.cont [14/16] 0.0, 128
        %219 = vxpose.xlu0.b32.cont [15/16] 0.0, 128
        %220 = vxpose.xlu0.b32.end [16/16] 0.0, 128
        %v221 = vpop.trf.xlu0
        %v222 = vpop.trf.xlu0
        %v223 = vpop.trf.xlu0
        %v224 = vpop.trf.xlu0
        %v225 = vpop.trf.xlu0
        %v226 = vpop.trf.xlu0
        %v227 = vpop.trf.xlu0
        %v228 = vpop.trf.xlu0
        %v229 = vpop.trf.xlu0
        %v230 = vpop.trf.xlu0
        %v231 = vpop.trf.xlu0
        %v232 = vpop.trf.xlu0
        %v233 = vpop.trf.xlu0
        %v234 = vpop.trf.xlu0
        %v235 = vpop.trf.xlu0
        %v236 = vpop.trf.xlu0
        %237 = vxpose.xlu0.b32.start [1/16] %v202, 128
        %238 = vxpose.xlu0.b32.cont [2/16] 0.0, 128
        %239 = vxpose.xlu0.b32.cont [3/16] 0.0, 128
        %240 = vxpose.xlu0.b32.cont [4/16] 0.0, 128
        %241 = vxpose.xlu0.b32.cont [5/16] 0.0, 128
        %242 = vxpose.xlu0.b32.cont [6/16] 0.0, 128
        %243 = vxpose.xlu0.b32.cont [7/16] 0.0, 128
        %244 = vxpose.xlu0.b32.cont [8/16] 0.0, 128
        %245 = vxpose.xlu0.b32.cont [9/16] 0.0, 128
        %246 = vxpose.xlu0.b32.cont [10/16] 0.0, 128
        %247 = vxpose.xlu0.b32.cont [11/16] 0.0, 128
        %248 = vxpose.xlu0.b32.cont [12/16] 0.0, 128
        %249 = vxpose.xlu0.b32.cont [13/16] 0.0, 128
        %250 = vxpose.xlu0.b32.cont [14/16] 0.0, 128
        %251 = vxpose.xlu0.b32.cont [15/16] 0.0, 128
        %252 = vxpose.xlu0.b32.end [16/16] 0.0, 128
        %v253 = vpop.trf.xlu0
        %v254 = vpop.trf.xlu0
        %v255 = vpop.trf.xlu0
        %v256 = vpop.trf.xlu0
        %v257 = vpop.trf.xlu0
        %v258 = vpop.trf.xlu0
        %v259 = vpop.trf.xlu0
        %v260 = vpop.trf.xlu0
        %v261 = vpop.trf.xlu0
        %v262 = vpop.trf.xlu0
        %v263 = vpop.trf.xlu0
        %v264 = vpop.trf.xlu0
        %v265 = vpop.trf.xlu0
        %v266 = vpop.trf.xlu0
        %v267 = vpop.trf.xlu0
        %v268 = vpop.trf.xlu0
        %vm269 = vcmask 31744
        %v271 = vsel %vm269, %v221, 0
        %v274 = vsel %vm269, %v222, 0
        %v277 = vsel %vm269, %v223, 0
        %v280 = vsel %vm269, %v224, 0
        %v283 = vsel %vm269, %v225, 0
        %v286 = vsel %vm269, %v226, 0
        %v289 = vsel %vm269, %v227, 0
        %v292 = vsel %vm269, %v228, 0
        %v295 = vsel %vm269, %v229, 0
        %v298 = vsel %vm269, %v230, 0
        %v301 = vsel %vm269, %v231, 0
        %v304 = vsel %vm269, %v232, 0
        %v307 = vsel %vm269, %v233, 0
        %v310 = vsel %vm269, %v234, 0
        %v313 = vsel %vm269, %v235, 0
        %v316 = vsel %vm269, %v236, 0
        %v319 = vsel %vm269, %v253, 0
        %v322 = vsel %vm269, %v254, 0
        %v325 = vsel %vm269, %v255, 0
        %v328 = vsel %vm269, %v256, 0
        %v331 = vsel %vm269, %v257, 0
        %v334 = vsel %vm269, %v258, 0
        %v337 = vsel %vm269, %v259, 0
        %v340 = vsel %vm269, %v260, 0
        %v343 = vsel %vm269, %v261, 0
        %v346 = vsel %vm269, %v262, 0
        %v349 = vsel %vm269, %v263, 0
        %v352 = vsel %vm269, %v264, 0
        %v355 = vsel %vm269, %v265, 0
        %v358 = vsel %vm269, %v266, 0
        %v361 = vsel %vm269, %v267, 0
        %v364 = vsel %vm269, %v268, 0
        %v367 = vsel %vm269, %v197, 0
        %369 = vmatpush.xpose.msra.mxu0 0.0
        %370 = vmatpush.xpose.msra.mxu0 0.0
        %371 = vmatpush.xpose.msra.mxu0 0.0
        %372 = vmatpush.xpose.msra.mxu0 0.0
        %373 = vmatpush.xpose.msra.mxu0 0.0
        %374 = vmatpush.xpose.msra.mxu0 0.0
        %375 = vmatpush.xpose.msra.mxu0 0.0
        %376 = vmatpush.xpose.msra.mxu0 0.0
        %377 = vmatpush.xpose.msra.mxu0 0.0
        %378 = vmatpush.xpose.msra.mxu0 0.0
        %379 = vmatpush.xpose.msra.mxu0 0.0
        %380 = vmatpush.xpose.msra.mxu0 0.0
        %381 = vmatpush.xpose.msra.mxu0 0.0
        %382 = vmatpush.xpose.msra.mxu0 0.0
        %383 = vmatpush.xpose.msra.mxu0 0.0
        %384 = vmatpush.xpose.msra.mxu0 %v367
        %385 = vmatmul.f32.gmra.mxu0 %v271
        %v386 = vpop.f32.mrf.mxu0
        %v387 = vadd.f32 0.0, %v386
        %388 = vmatmul.f32.gmra.mxu0 %v274
        %v389 = vpop.f32.mrf.mxu0
        %v390 = vadd.f32 0.0, %v389
        %391 = vmatmul.f32.gmra.mxu0 %v277
        %v392 = vpop.f32.mrf.mxu0
        %v393 = vadd.f32 0.0, %v392
        %394 = vmatmul.f32.gmra.mxu0 %v280
        %v395 = vpop.f32.mrf.mxu0
        %v396 = vadd.f32 0.0, %v395
        %397 = vmatmul.f32.gmra.mxu0 %v283
        %v398 = vpop.f32.mrf.mxu0
        %v399 = vadd.f32 0.0, %v398
        %400 = vmatmul.f32.gmra.mxu0 %v286
        %v401 = vpop.f32.mrf.mxu0
        %v402 = vadd.f32 0.0, %v401
        %403 = vmatmul.f32.gmra.mxu0 %v289
        %v404 = vpop.f32.mrf.mxu0
        %v405 = vadd.f32 0.0, %v404
        %406 = vmatmul.f32.gmra.mxu0 %v292
        %v407 = vpop.f32.mrf.mxu0
        %v408 = vadd.f32 0.0, %v407
        %409 = vmatmul.f32.gmra.mxu0 %v295
        %v410 = vpop.f32.mrf.mxu0
        %v411 = vadd.f32 0.0, %v410
        %412 = vmatmul.f32.gmra.mxu0 %v298
        %v413 = vpop.f32.mrf.mxu0
        %v414 = vadd.f32 0.0, %v413
        %415 = vmatmul.f32.gmra.mxu0 %v301
        %v416 = vpop.f32.mrf.mxu0
        %v417 = vadd.f32 0.0, %v416
        %418 = vmatmul.f32.gmra.mxu0 %v304
        %v419 = vpop.f32.mrf.mxu0
        %v420 = vadd.f32 0.0, %v419
        %421 = vmatmul.f32.gmra.mxu0 %v307
        %v422 = vpop.f32.mrf.mxu0
        %v423 = vadd.f32 0.0, %v422
        %424 = vmatmul.f32.gmra.mxu0 %v310
        %v425 = vpop.f32.mrf.mxu0
        %v426 = vadd.f32 0.0, %v425
        %427 = vmatmul.f32.gmra.mxu0 %v313
        %v428 = vpop.f32.mrf.mxu0
        %v429 = vadd.f32 0.0, %v428
        %430 = vmatmul.f32.gmra.mxu0 %v316
        %v431 = vpop.f32.mrf.mxu0
        %v432 = vadd.f32 0.0, %v431
        %433 = vmatmul.f32.gmra.mxu0 %v319
        %v434 = vpop.f32.mrf.mxu0
        %v435 = vadd.f32 0.0, %v434
        %436 = vmatmul.f32.gmra.mxu0 %v322
        %v437 = vpop.f32.mrf.mxu0
        %v438 = vadd.f32 0.0, %v437
        %439 = vmatmul.f32.gmra.mxu0 %v325
        %v440 = vpop.f32.mrf.mxu0
        %v441 = vadd.f32 0.0, %v440
        %442 = vmatmul.f32.gmra.mxu0 %v328
        %v443 = vpop.f32.mrf.mxu0
        %v444 = vadd.f32 0.0, %v443
        %445 = vmatmul.f32.gmra.mxu0 %v331
        %v446 = vpop.f32.mrf.mxu0
        %v447 = vadd.f32 0.0, %v446
        %448 = vmatmul.f32.gmra.mxu0 %v334
        %v449 = vpop.f32.mrf.mxu0
        %v450 = vadd.f32 0.0, %v449
        %451 = vmatmul.f32.gmra.mxu0 %v337
        %v452 = vpop.f32.mrf.mxu0
        %v453 = vadd.f32 0.0, %v452
        %454 = vmatmul.f32.gmra.mxu0 %v340
        %v455 = vpop.f32.mrf.mxu0
        %v456 = vadd.f32 0.0, %v455
        %457 = vmatmul.f32.gmra.mxu0 %v343
        %v458 = vpop.f32.mrf.mxu0
        %v459 = vadd.f32 0.0, %v458
        %460 = vmatmul.f32.gmra.mxu0 %v346
        %v461 = vpop.f32.mrf.mxu0
        %v462 = vadd.f32 0.0, %v461
        %463 = vmatmul.f32.gmra.mxu0 %v349
        %v464 = vpop.f32.mrf.mxu0
        %v465 = vadd.f32 0.0, %v464
        %466 = vmatmul.f32.gmra.mxu0 %v352
        %v467 = vpop.f32.mrf.mxu0
        %v468 = vadd.f32 0.0, %v467
        %469 = vmatmul.f32.gmra.mxu0 %v355
        %v470 = vpop.f32.mrf.mxu0
        %v471 = vadd.f32 0.0, %v470
        %472 = vmatmul.f32.gmra.mxu0 %v358
        %v473 = vpop.f32.mrf.mxu0
        %v474 = vadd.f32 0.0, %v473
        %475 = vmatmul.f32.gmra.mxu0 %v361
        %v476 = vpop.f32.mrf.mxu0
        %v477 = vadd.f32 0.0, %v476
        %478 = vmatmul.f32.gmra.mxu0 %v364
        %v479 = vpop.f32.mrf.mxu0
        %v480 = vadd.f32 0.0, %v479
        %481 = vdwg.mxu0
        %482 = vxpose.xlu0.b32.start [1/16] %v387, 128
        %483 = vxpose.xlu0.b32.cont [2/16] %v390, 128
        %484 = vxpose.xlu0.b32.cont [3/16] %v393, 128
        %485 = vxpose.xlu0.b32.cont [4/16] %v396, 128
        %486 = vxpose.xlu0.b32.cont [5/16] %v399, 128
        %487 = vxpose.xlu0.b32.cont [6/16] %v402, 128
        %488 = vxpose.xlu0.b32.cont [7/16] %v405, 128
        %489 = vxpose.xlu0.b32.cont [8/16] %v408, 128
        %490 = vxpose.xlu0.b32.cont [9/16] %v411, 128
        %491 = vxpose.xlu0.b32.cont [10/16] %v414, 128
        %492 = vxpose.xlu0.b32.cont [11/16] %v417, 128
        %493 = vxpose.xlu0.b32.cont [12/16] %v420, 128
        %494 = vxpose.xlu0.b32.cont [13/16] %v423, 128
        %495 = vxpose.xlu0.b32.cont [14/16] %v426, 128
        %496 = vxpose.xlu0.b32.cont [15/16] %v429, 128
        %497 = vxpose.xlu0.b32.end [16/16] %v432, 128
        %v498 = vpop.trf.xlu0
        %v499 = vpop.trf.xlu0
        %v500 = vpop.trf.xlu0
        %v501 = vpop.trf.xlu0
        %v502 = vpop.trf.xlu0
        %v503 = vpop.trf.xlu0
        %v504 = vpop.trf.xlu0
        %v505 = vpop.trf.xlu0
        %v506 = vpop.trf.xlu0
        %v507 = vpop.trf.xlu0
        %v508 = vpop.trf.xlu0
        %v509 = vpop.trf.xlu0
        %v510 = vpop.trf.xlu0
        %v511 = vpop.trf.xlu0
        %v512 = vpop.trf.xlu0
        %v513 = vpop.trf.xlu0
        %514 = vxpose.xlu0.b32.start [1/16] %v435, 128
        %515 = vxpose.xlu0.b32.cont [2/16] %v438, 128
        %516 = vxpose.xlu0.b32.cont [3/16] %v441, 128
        %517 = vxpose.xlu0.b32.cont [4/16] %v444, 128
        %518 = vxpose.xlu0.b32.cont [5/16] %v447, 128
        %519 = vxpose.xlu0.b32.cont [6/16] %v450, 128
        %520 = vxpose.xlu0.b32.cont [7/16] %v453, 128
        %521 = vxpose.xlu0.b32.cont [8/16] %v456, 128
        %522 = vxpose.xlu0.b32.cont [9/16] %v459, 128
        %523 = vxpose.xlu0.b32.cont [10/16] %v462, 128
        %524 = vxpose.xlu0.b32.cont [11/16] %v465, 128
        %525 = vxpose.xlu0.b32.cont [12/16] %v468, 128
        %526 = vxpose.xlu0.b32.cont [13/16] %v471, 128
        %527 = vxpose.xlu0.b32.cont [14/16] %v474, 128
        %528 = vxpose.xlu0.b32.cont [15/16] %v477, 128
        %529 = vxpose.xlu0.b32.end [16/16] %v480, 128
        %v530 = vpop.trf.xlu0
        %v531 = vpop.trf.xlu0
        %v532 = vpop.trf.xlu0
        %v533 = vpop.trf.xlu0
        %v534 = vpop.trf.xlu0
        %v535 = vpop.trf.xlu0
        %v536 = vpop.trf.xlu0
        %v537 = vpop.trf.xlu0
        %v538 = vpop.trf.xlu0
        %v539 = vpop.trf.xlu0
        %v540 = vpop.trf.xlu0
        %v541 = vpop.trf.xlu0
        %v542 = vpop.trf.xlu0
        %v543 = vpop.trf.xlu0
        %v544 = vpop.trf.xlu0
        %v545 = vpop.trf.xlu0
        %v548 = vrot.slane %v530, 4
        %vm549 = vcmask 1043456
        %v550 = vsel %vm549, %v498, %v548
        %552 = vst [vmem:[%s194] sm:$0xff] %v550
        %s553 = sand.u32 %s91, 1
        %s554 = scalar_lea.sflag [#allocation4], %s553
        %s555 = sand.u32 %s91, 1
        %s556 = smul.addr %s555, 8
        %s557 = scalar_lea.vmem [#allocation7], %s556
        // Predicated region
        $region37: #{tpu_custom_call.1} parent=27 // pred_check
          %p558 = pneg %p101
        $region38: #{tpu_custom_call.1} parent=27 // pred_check_branch
          %560 = sbr.rel (%p558) target = $region40
        $region39: #{tpu_custom_call.1} parent=27 // pred_region
          %s561 = smul.u32 2, %s25
          %563 = vsyncadd %s554, 0
          %s564 = smul.addr %s24, 2
          %s565 = sadd.s32 %s561, %s564
          %s566 = smul.addr %s565, 4
          %s567 = scalar_lea.hbm %s2, %s566
          %s569 = sshll.u32 %s557, 4
          %s570 = int_to_ptr.vmem [resolvable:$true] %s569
          %s571 = sshll.u32 %s567, 4
          %s572 = int_to_ptr.hbm [resolvable:$true] %s571
          %574 = dma.vmem_to_hbm [thread:$0]  %s570, 128, %s572, %s554
        $region40: #{tpu_custom_call.1} parent=27 // pred_fallthru
          _
      $region28: #{tpu_custom_call.1} parent=5 // pred_fallthru
        _
      %p575 = scmp.le.s32.totalorder 2, %s15
      // Predicated region
      $region41: #{tpu_custom_call.1} parent=5 // pred_check
        %p576 = pneg %p575
      $region42: #{tpu_custom_call.1} parent=5 // pred_check_branch
        %578 = sbr.rel (%p576) target = $region44
      $region43: #{tpu_custom_call.1} parent=5 // pred_region
        %s579 = ssub.s32 %s15, 2
        // Predicated region
        $region45: #{tpu_custom_call.1} parent=43 // pred_check
          %p580 = pneg %p107
        $region46: #{tpu_custom_call.1} parent=43 // pred_check_branch
          %582 = sbr.rel (%p580) target = $region48
        $region47: #{tpu_custom_call.1} parent=43 // pred_region
          %s583 = sand.u32 %s92, 1
          %s584 = scalar_lea.sflag [#allocation4], %s583
          %s585 = sand.u32 %s92, 1
          %s586 = smul.addr %s585, 8
          %s587 = scalar_lea.vmem [#allocation7], %s586
          %589 = dma.done %s584, 128
        $region48: #{tpu_custom_call.1} parent=43 // pred_fallthru
          _
      $region44: #{tpu_custom_call.1} parent=5 // pred_fallthru
        _
    $region6: #{tpu_custom_call.1} parent=1 // loop_footer
      %s19 = sadd.s32 1, %s15
    $region7: #{tpu_custom_call.1} parent=1 // loop_footer_branch
      %14 = sbr.rel target = $region3
    $region8: #{tpu_custom_call.1} parent=1 // loop_exit
      _
    %590 = vsyncpa [#allocation3], 1
    %s591 = scalar_lea.sflag [#allocation3], 1
    %592 = vsyncpa %s591, 1
    %593 = vsyncpa [#allocation6], 1
    %s594 = scalar_lea.sflag [#allocation6], 1
    %595 = vsyncpa %s594, 1
    %596 = vsyncpa [#allocation4], 1
    %s597 = scalar_lea.sflag [#allocation4], 1
    %598 = vsyncpa %s597, 1

</llo_original>
